<compile_context>
chip_gen: v7x
topology: tpu7x:2x2x1
jax: 0.10.0
libtpu: 0.0.40
codegen_flags: <defaults>
</compile_context>

<pallas_src>
import functools
import math

import jax
import jax.numpy as jnp
from jax import lax
from jax.experimental import pallas as pl
from jax.experimental.pallas import tpu as pltpu


# ---------------------------------------------------------------------------
# small helpers
# ---------------------------------------------------------------------------
_TILE_VMEM_BUDGET = 20 * 1024 * 1024     # double-buffered tiles + in-kernel fp32 intermediates
_VMEM_LIMIT_BYTES = 48 * 1024 * 1024     # scoped VMEM limit (v7x physical VMEM is 64 MiB)
_ROW_CAP = 2048                          # review: 512 -> 1024-2048 row tiles


def _round_up(x, m):
    return ((x + m - 1) // m) * m


def _pick_tile(total, cap, align=8):
    """Tile size (<= cap, multiple of `align`, or == padded total) and padded total."""
    t = min(cap, _round_up(total, align))
    return t, _round_up(total, t)


def _pick_row_cap(cin0, params):
    """VMEM-aware cap on MLP row-tile size (rows), shared by all layers."""
    cap = _ROW_CAP
    cin_dim, cin_bytes = cin0, 4                          # layer-0 input: fp32, unpadded cin
    n_layers = len(params)
    for li, (w, _b, _g, _bt) in enumerate(params):
        cout_p = _round_up(w.shape[0], 128)
        out_bytes = 2 if li < n_layers - 1 else 0         # last layer stores per-group, not per-row
        # double-buffered in/out tiles + fp32 in-kernel y/ym intermediates (~8B/row/cout lane)
        per_row = 2 * cin_bytes * cin_dim + 2 * out_bytes * cout_p + 8 * cout_p
        w_bytes = 2 * cin_dim * cout_p * (4 if li == 0 else 2)   # (double-buffered) weight
        rows = (_TILE_VMEM_BUDGET - w_bytes) // max(per_row, 1)
        cap = min(cap, max(int(rows), 8))
        cin_dim, cin_bytes = cout_p, 2                    # deeper layers: bf16, padded channels
    return cap


def _pick_group_tile(G, K, row_cap):
    """Group-tile tg (rows-per-tile = tg*K) and padded group count g_pad.

    tg is a multiple of 8 (or equal to g_pad), so both the row BlockSpecs (tm = tg*K)
    and the per-group output BlockSpecs are legal; prefers an even tile count (v7x)."""
    tg_cap = max(1, row_cap // max(K, 1))
    if tg_cap >= G:
        return G, G                                       # one full-extent tile (small problem)
    tg = max(8, (tg_cap // 8) * 8)
    for cand in range(tg, 7, -8):                         # prefer an even number of tiles
        if -(-G // cand) % 2 == 0:
            tg = cand
            break
    return tg, _round_up(G, tg)


# ---------------------------------------------------------------------------
# Kernel 1: ball-query in-radius mask (pure VPU, lane-dense N, int8 output)
# ---------------------------------------------------------------------------
def _ball_mask_kernel(q_ref, p_ref, m_ref, *, r2):
    q = q_ref[0]                                    # [Ts, 3]   queries (coords last, tiny)
    p = p_ref[0]                                    # [3, Np]   points channels-first (lanes = N)
    d = (q[:, 0:1] - p[0:1, :]) ** 2
    d = d + (q[:, 1:2] - p[1:2, :]) ** 2
    d = d + (q[:, 2:3] - p[2:3, :]) ** 2
    m_ref[0] = (d <= r2).astype(jnp.int8)


def ball_mask(new_xyz_bsc, xyz_b3n, radius):
    """new_xyz [B,S,3], xyz [B,3,N] -> int8 in-radius mask [B,S,N]."""
    B, S, _ = new_xyz_bsc.shape
    N = xyz_b3n.shape[2]
    ts, s_pad = _pick_tile(S, 256, align=32)        # multiple of 32 -> native int8 sublane tiling
    n_pad = _round_up(N, 128)
    q = jnp.pad(new_xyz_bsc.astype(jnp.float32), ((0, 0), (0, s_pad - S), (0, 0)))
    p = jnp.pad(xyz_b3n.astype(jnp.float32), ((0, 0), (0, 0), (0, n_pad - N)))
    mask = pl.pallas_call(
        functools.partial(_ball_mask_kernel, r2=float(radius) ** 2),
        out_shape=jax.ShapeDtypeStruct((B, s_pad, n_pad), jnp.int8),
        grid=(B, s_pad // ts),
        in_specs=[
            pl.BlockSpec((1, ts, 3), lambda b, s: (b, s, 0)),
            pl.BlockSpec((1, 3, n_pad), lambda b, s: (b, 0, 0)),
        ],
        out_specs=pl.BlockSpec((1, ts, n_pad), lambda b, s: (b, s, 0)),
        compiler_params=pltpu.CompilerParams(
            dimension_semantics=("parallel", "parallel")),
    )(q, p)
    return mask[:, :S, :N]


# ---------------------------------------------------------------------------
# Kernel 2: fused MLP layer = (prev BN affine + ReLU) -> 1x1 conv matmul + bias
#           + per-tile partial BatchNorm statistics; bf16 activation storage
# ---------------------------------------------------------------------------
def _mlp_layer_kernel(x_ref, w_ref, b_ref, scale_ref, shift_ref, y_ref, st_ref,
                      *, pre_act, m_valid, tm):
    x = x_ref[...]                                             # fp32 (layer 0) or bf16
    if pre_act:
        a = jnp.maximum(x.astype(jnp.float32) * scale_ref[...] + shift_ref[...], 0.0)
        x = a.astype(x_ref.dtype)                              # back to bf16 for the MXU
    y = jnp.dot(x, w_ref[...], preferred_element_type=jnp.float32) + b_ref[...]
    # BN partial sums over valid (non-padded) rows, from the fp32 accumulator
    rows = pl.program_id(0) * tm + lax.broadcasted_iota(jnp.int32, (tm, 1), 0)
    valid = (rows < m_valid).astype(jnp.float32)
    ym = y * valid
    st_ref[0] = jnp.concatenate([jnp.sum(ym, axis=0, keepdims=True),
                                 jnp.sum(ym * ym, axis=0, keepdims=True)], axis=0)
    y_ref[...] = y.astype(y_ref.dtype)                         # bf16 inter-layer storage


def mlp_layer(x, w_t, b, scale, shift, *, pre_act, m_valid, tm, out_dtype, vmem_limit):
    m_pad, cin_dim = x.shape
    cout_p = w_t.shape[1]
    n_tiles = m_pad // tm
    # NOTE: w/b/scale/shift have constant index_maps, so they are DMA'd only once; a further
    # VMEM saving on v7x would be pipeline_mode=pl.Buffered(1) on those specs.
    return pl.pallas_call(
        functools.partial(_mlp_layer_kernel, pre_act=pre_act, m_valid=m_valid, tm=tm),
        out_shape=(jax.ShapeDtypeStruct((m_pad, cout_p), out_dtype),
                   jax.ShapeDtypeStruct((n_tiles, 2, cout_p), jnp.float32)),
        grid=(n_tiles,),
        in_specs=[
            pl.BlockSpec((tm, cin_dim), lambda i: (i, 0)),
            pl.BlockSpec((cin_dim, cout_p), lambda i: (0, 0)),
            pl.BlockSpec((1, cout_p), lambda i: (0, 0)),
            pl.BlockSpec((1, cin_dim), lambda i: (0, 0)),
            pl.BlockSpec((1, cin_dim), lambda i: (0, 0)),
        ],
        out_specs=(pl.BlockSpec((tm, cout_p), lambda i: (i, 0)),
                   pl.BlockSpec((1, 2, cout_p), lambda i: (i, 0, 0))),
        compiler_params=pltpu.CompilerParams(
            dimension_semantics=("parallel",), vmem_limit_bytes=vmem_limit),
    )(x, w_t, b, scale, shift)


# ---------------------------------------------------------------------------
# Kernel 3: LAST MLP layer with the max-over-nsample fused in: emits per-group
#           max and min of the fp32 accumulator + BN partial statistics.
# ---------------------------------------------------------------------------
def _mlp_last_kernel(x_ref, w_ref, b_ref, scale_ref, shift_ref,
                     gmax_ref, gmin_ref, st_ref, *, pre_act, m_valid, tm, k):
    x = x_ref[...]
    if pre_act:
        a = jnp.maximum(x.astype(jnp.float32) * scale_ref[...] + shift_ref[...], 0.0)
        x = a.astype(x_ref.dtype)
    y = jnp.dot(x, w_ref[...], preferred_element_type=jnp.float32) + b_ref[...]
    rows = pl.program_id(0) * tm + lax.broadcasted_iota(jnp.int32, (tm, 1), 0)
    valid = (rows < m_valid).astype(jnp.float32)
    ym = y * valid
    st_ref[0] = jnp.concatenate([jnp.sum(ym, axis=0, keepdims=True),
                                 jnp.sum(ym * ym, axis=0, keepdims=True)], axis=0)
    yg = y.reshape(tm // k, k, y.shape[1])                     # sublane-only reshape
    gmax_ref[...] = jnp.max(yg, axis=1)
    gmin_ref[...] = jnp.min(yg, axis=1)


def mlp_layer_last(x, w_t, b, scale, shift, *, pre_act, m_valid, tm, k, vmem_limit):
    m_pad, cin_dim = x.shape
    cout_p = w_t.shape[1]
    n_tiles = m_pad // tm
    tg = tm // k
    g_pad = m_pad // k
    return pl.pallas_call(
        functools.partial(_mlp_last_kernel, pre_act=pre_act, m_valid=m_valid, tm=tm, k=k),
        out_shape=(jax.ShapeDtypeStruct((g_pad, cout_p), jnp.float32),
                   jax.ShapeDtypeStruct((g_pad, cout_p), jnp.float32),
                   jax.ShapeDtypeStruct((n_tiles, 2, cout_p), jnp.float32)),
        grid=(n_tiles,),
        in_specs=[
            pl.BlockSpec((tm, cin_dim), lambda i: (i, 0)),
            pl.BlockSpec((cin_dim, cout_p), lambda i: (0, 0)),
            pl.BlockSpec((1, cout_p), lambda i: (0, 0)),
            pl.BlockSpec((1, cin_dim), lambda i: (0, 0)),
            pl.BlockSpec((1, cin_dim), lambda i: (0, 0)),
        ],
        out_specs=(pl.BlockSpec((tg, cout_p), lambda i: (i, 0)),
                   pl.BlockSpec((tg, cout_p), lambda i: (i, 0)),
                   pl.BlockSpec((1, 2, cout_p), lambda i: (i, 0, 0))),
        compiler_params=pltpu.CompilerParams(
            dimension_semantics=("parallel",), vmem_limit_bytes=vmem_limit),
    )(x, w_t, b, scale, shift)


# ---------------------------------------------------------------------------
# Kernel 4: finalize = per-channel select(max/min by sign of BN scale) + affine + ReLU
# ---------------------------------------------------------------------------
def _bn_relu_select_kernel(gmax_ref, gmin_ref, scale_ref, shift_ref, o_ref):
    s = scale_ref[...]                                         # [1, Cp]
    v = jnp.where(s >= 0.0, gmax_ref[...], gmin_ref[...])      # exact: affine is monotone/channel
    o_ref[...] = jnp.maximum(v * s + shift_ref[...], 0.0)


def bn_relu_select(gmax, gmin, scale, shift, *, tg, vmem_limit):
    g_pad, cp = gmax.shape
    return pl.pallas_call(
        _bn_relu_select_kernel,
        out_shape=jax.ShapeDtypeStruct((g_pad, cp), jnp.float32),
        grid=(g_pad // tg,),
        in_specs=[
            pl.BlockSpec((tg, cp), lambda i: (i, 0)),
            pl.BlockSpec((tg, cp), lambda i: (i, 0)),
            pl.BlockSpec((1, cp), lambda i: (0, 0)),
            pl.BlockSpec((1, cp), lambda i: (0, 0)),
        ],
        out_specs=pl.BlockSpec((tg, cp), lambda i: (i, 0)),
        compiler_params=pltpu.CompilerParams(
            dimension_semantics=("parallel",), vmem_limit_bytes=vmem_limit),
    )(gmax, gmin, scale, shift)


# ---------------------------------------------------------------------------
# Plain-JAX glue: FPS, gathers, first-K in-radius index selection (data dependent)
# ---------------------------------------------------------------------------
def _farthest_point_sample(xyz, npoint):
    """xyz [B,N,3] -> indices [B,npoint]; deterministic start index 0 (matches reference)."""
    B, N, _ = xyz.shape

    def body(i, carry):
        centroids, distance, farthest = carry
        centroids = centroids.at[:, i].set(farthest)
        centroid = xyz[jnp.arange(B), farthest, :][:, None, :]
        dist = jnp.sum((xyz - centroid) ** 2, axis=-1)
        distance = jnp.minimum(distance, dist)
        farthest = jnp.argmax(distance, axis=-1).astype(jnp.int32)
        return centroids, distance, farthest

    carry = (jnp.zeros((B, npoint), jnp.int32),
             jnp.full((B, N), 1e10, jnp.float32),
             jnp.zeros((B,), jnp.int32))
    centroids, _, _ = lax.fori_loop(0, npoint, body, carry)
    return centroids


def _index_points(points, idx):
    """points [B,N,C], idx [B,...] -> gathered [B,...,C]."""
    return jax.vmap(lambda p, i: p[i])(points, idx)


def _ball_query_from_mask(mask, nsample, n_points):
    """int8 mask [B,S,N] -> first-nsample in-radius indices [B,S,nsample] (torch semantics)."""
    arange = jnp.arange(n_points, dtype=jnp.int32)
    vals = jnp.where(mask > 0, arange[None, None, :], jnp.int32(n_points))
    # First-nsample selection via partial top-k (avoids a full O(N log N) sort over N).
    neg_smallest, _ = lax.top_k(-vals, nsample)
    idx = -neg_smallest                                        # ascending smallest indices
    first = idx[:, :, :1]
    return jnp.where(idx == n_points, first, idx)


# ---------------------------------------------------------------------------
# Module forward (wrapper)
# ---------------------------------------------------------------------------
def pointnet_sa_forward(xyz, points, params, *, npoint, radius, nsample, group_all):
    """xyz [B,3,N], points [B,D,N]|None -> (new_xyz [B,3,S], new_points [B,D',S]).
    MLP = 1x1 Conv2d + BatchNorm2d (training-mode batch statistics, eps=1e-5) + ReLU,
    followed by max over nsample (matches the PyTorch module in train mode)."""
    xyz = xyz.astype(jnp.float32)
    B, _, N = xyz.shape
    xyz_bnc = jnp.transpose(xyz, (0, 2, 1))                            # [B,N,3]
    pts_bnd = None if points is None else jnp.transpose(points, (0, 2, 1)).astype(jnp.float32)

    if group_all:
        S, K = 1, N
        new_xyz = jnp.zeros((B, 1, 3), jnp.float32)
        grouped = xyz_bnc[:, None, :, :]
        if pts_bnd is not None:
            grouped = jnp.concatenate([grouped, pts_bnd[:, None, :, :]], axis=-1)
    else:
        S, K = npoint, nsample
        fps_idx = _farthest_point_sample(xyz_bnc, npoint)              # [B,S]
        new_xyz = _index_points(xyz_bnc, fps_idx)                      # [B,S,3]
        mask = ball_mask(new_xyz, xyz, radius)                         # Pallas: int8 [B,S,N]
        idx = _ball_query_from_mask(mask, nsample, N)                  # [B,S,K]
        grouped = _index_points(xyz_bnc, idx) - new_xyz[:, :, None, :]
        if pts_bnd is not None:
            grouped = jnp.concatenate([grouped, _index_points(pts_bnd, idx)], axis=-1)

    cin = grouped.shape[-1]
    G = B * S
    m_valid = G * K
    feat = grouped.reshape(m_valid, cin)

    row_cap = _pick_row_cap(cin, params)
    tg, g_pad = _pick_group_tile(G, K, row_cap)                        # rows tiled in whole groups
    tm = tg * K
    m_pad = g_pad * K
    x = jnp.pad(feat, ((0, m_pad - m_valid), (0, 0)))                  # rows only; no channel pad

    n_layers = len(params)
    scale = shift = None
    gmax = gmin = None
    for li, (w, b, gamma, beta) in enumerate(params):
        cout, cin_l = w.shape
        cout_p = _round_up(cout, 128)
        is_last = li == n_layers - 1
        if li == 0:
            # fp32 raw features with the true (unpadded) channel dim; fp32 weight
            w_t = jnp.pad(w.astype(jnp.float32).T, ((0, 0), (0, cout_p - cout)))
            scale_in = jnp.ones((1, cin_l), jnp.float32)               # unused (pre_act=False)
            shift_in = jnp.zeros((1, cin_l), jnp.float32)
        else:
            cin_lp = x.shape[1]                                        # previous cout_p
            w_t = jnp.pad(w.astype(jnp.float32).T,
                          ((0, cin_lp - cin_l), (0, cout_p - cout))).astype(jnp.bfloat16)
            scale_in, shift_in = scale, shift
        b_p = jnp.pad(b.astype(jnp.float32), (0, cout_p - cout)).reshape(1, cout_p)

        if is_last:
            gmax, gmin, pstats = mlp_layer_last(
                x, w_t, b_p, scale_in, shift_in,
                pre_act=(li > 0), m_valid=m_valid, tm=tm, k=K,
                vmem_limit=_VMEM_LIMIT_BYTES)
        else:
            x, pstats = mlp_layer(
                x, w_t, b_p, scale_in, shift_in,
                pre_act=(li > 0), m_valid=m_valid, tm=tm,
                out_dtype=jnp.bfloat16, vmem_limit=_VMEM_LIMIT_BYTES)

        stats = jnp.sum(pstats, axis=0)                                # [2, cout_p]
        mean = stats[0] / m_valid
        var = jnp.maximum(stats[1] / m_valid - mean * mean, 0.0)       # guard cancellation
        inv = lax.rsqrt(var + 1e-5)
        g_p = jnp.pad(gamma.astype(jnp.float32), (0, cout_p - cout))
        be_p = jnp.pad(beta.astype(jnp.float32), (0, cout_p - cout))
        scale = (g_p * inv).reshape(1, cout_p)
        shift = (be_p - mean * g_p * inv).reshape(1, cout_p)

    pooled = bn_relu_select(gmax, gmin, scale, shift, tg=tg,
                            vmem_limit=_VMEM_LIMIT_BYTES)              # Pallas finalize kernel
    cout_last = params[-1][0].shape[0]
    new_points = pooled[:G, :cout_last].reshape(B, S, cout_last)
    return jnp.transpose(new_xyz, (0, 2, 1)), jnp.transpose(new_points, (0, 2, 1))


def init_params(key, in_channel, mlp):
    """Conv2d(1x1) weights/bias (PyTorch fan-in uniform init); BN gamma=1, beta=0."""
    params = []
    last = in_channel
    for out_c in mlp:
        key, k1, k2 = jax.random.split(key, 3)
        bound = 1.0 / math.sqrt(last)
        w = jax.random.uniform(k1, (out_c, last), jnp.float32, -bound, bound)
        b = jax.random.uniform(k2, (out_c,), jnp.float32, -bound, bound)
        params.append((w, b,
                       jnp.ones((out_c,), jnp.float32),
                       jnp.zeros((out_c,), jnp.float32)))
        last = out_c
    return params


# ---------------------------------------------------------------------------
# Pure-JAX fp32 reference (no Pallas) for the correctness check
# ---------------------------------------------------------------------------
def _ball_query_ref(sqrdists, radius, nsample, n_points):
    arange = jnp.arange(n_points, dtype=jnp.int32)[None, None, :]
    vals = jnp.where(sqrdists <= radius ** 2, arange, n_points)
    vals = jnp.sort(vals, axis=-1)[:, :, :nsample]
    first = vals[:, :, :1]
    return jnp.where(vals == n_points, first, vals)


def reference_forward(xyz, points, params, *, npoint, radius, nsample, group_all):
    xyz = xyz.astype(jnp.float32)
    B, _, N = xyz.shape
    xyz_bnc = jnp.transpose(xyz, (0, 2, 1))
    pts_bnd = None if points is None else jnp.transpose(points, (0, 2, 1)).astype(jnp.float32)
    if group_all:
        S, K = 1, N
        new_xyz = jnp.zeros((B, 1, 3), jnp.float32)
        grouped = xyz_bnc[:, None, :, :]
        if pts_bnd is not None:
            grouped = jnp.concatenate([grouped, pts_bnd[:, None, :, :]], axis=-1)
    else:
        S, K = npoint, nsample
        fps_idx = _farthest_point_sample(xyz_bnc, npoint)
        new_xyz = _index_points(xyz_bnc, fps_idx)
        q, p = new_xyz, xyz_bnc
        d = (q[:, :, None, 0] - p[:, None, :, 0]) ** 2
        d = d + (q[:, :, None, 1] - p[:, None, :, 1]) ** 2
        d = d + (q[:, :, None, 2] - p[:, None, :, 2]) ** 2
        idx = _ball_query_ref(d, radius, nsample, N)
        grouped = _index_points(xyz_bnc, idx) - new_xyz[:, :, None, :]
        if pts_bnd is not None:
            grouped = jnp.concatenate([grouped, _index_points(pts_bnd, idx)], axis=-1)
    m = B * S * K
    x = grouped.reshape(m, -1)
    for (w, b, gamma, beta) in params:
        y = jnp.dot(x, w.T, preferred_element_type=jnp.float32) + b[None, :]
        mean = jnp.mean(y, axis=0)
        var = jnp.mean((y - mean) ** 2, axis=0)
        x = jnp.maximum((y - mean) * lax.rsqrt(var + 1e-5) * gamma + beta, 0.0)
    pooled = jnp.max(x.reshape(B, S, K, -1), axis=2)
    return jnp.transpose(new_xyz, (0, 2, 1)), jnp.transpose(pooled, (0, 2, 1))


if __name__ == "__main__":
    key = jax.random.PRNGKey(0)
    B, N, D = 2, 16, 6
    npoint, radius, nsample = 4, 1.5, 8
    in_channel = D + 3
    mlp = [32, 64]

    key, k1, k2, kp = jax.random.split(key, 4)
    xyz = jax.random.normal(k1, (B, 3, N), jnp.float32)
    points = jax.random.normal(k2, (B, D, N), jnp.float32)
    params = init_params(kp, in_channel, mlp)

    new_xyz, new_points = pointnet_sa_forward(
        xyz, points, params, npoint=npoint, radius=radius, nsample=nsample, group_all=False)
    new_xyz = jax.block_until_ready(new_xyz)
    new_points = jax.block_until_ready(new_points)
    assert new_xyz.shape == (B, 3, npoint), new_xyz.shape
    assert new_points.shape == (B, mlp[-1], npoint), new_points.shape

    ref_xyz, ref_points = reference_forward(
        xyz, points, params, npoint=npoint, radius=radius, nsample=nsample, group_all=False)
    ref_xyz = jax.block_until_ready(ref_xyz)
    ref_points = jax.block_until_ready(ref_points)

    assert bool(jnp.allclose(new_xyz, ref_xyz, atol=1e-5, rtol=1e-5)), \
        float(jnp.max(jnp.abs(new_xyz - ref_xyz)))
    # Inter-layer activations/weights are stored in bf16 (reference is full fp32), so the
    # tolerance is wider than the old all-fp32 check.
    assert bool(jnp.allclose(new_points, ref_points, atol=5e-2, rtol=5e-2)), \
        float(jnp.max(jnp.abs(new_points - ref_points)))

    print("KERNEL_OK")
</pallas_src>

<mosaic_0001>
module attributes {stable_mosaic.version = 11 : i64} {
  func.func @_ball_mask_kernel(%arg0: i32, %arg1: i32, %arg2: memref<1x32x3xf32, #tpu.memory_space<vmem>>, %arg3: memref<1x3x128xf32, #tpu.memory_space<vmem>>, %arg4: memref<1x32x128xi8, #tpu.memory_space<vmem>>) attributes {dimension_semantics = [#tpu.dimension_semantics<parallel>, #tpu.dimension_semantics<parallel>], iteration_bounds = array<i64: 2, 1>, scalar_prefetch = 0 : i64, scratch_operands = 0 : i64, tpu.core_type = #tpu.core_type<tc>, window_params = [{transform_indices = @transform_0, window_bounds = array<i64: 1, 32, 3>}, {transform_indices = @transform_1, window_bounds = array<i64: 1, 3, 128>}, {transform_indices = @transform_2, window_bounds = array<i64: 1, 32, 128>}]} {
    %c0 = arith.constant 0 : index
    %c0_0 = arith.constant 0 : index
    %c0_1 = arith.constant 0 : index
    %0 = vector.load %arg2[%c0, %c0_0, %c0_1] : memref<1x32x3xf32, #tpu.memory_space<vmem>>, vector<1x32x3xf32>
    %1 = vector.shape_cast %0 : vector<1x32x3xf32> to vector<32x3xf32>
    %c0_2 = arith.constant 0 : index
    %c0_3 = arith.constant 0 : index
    %c0_4 = arith.constant 0 : index
    %2 = vector.load %arg3[%c0_2, %c0_3, %c0_4] : memref<1x3x128xf32, #tpu.memory_space<vmem>>, vector<1x3x128xf32>
    %3 = vector.shape_cast %2 : vector<1x3x128xf32> to vector<3x128xf32>
    %4 = vector.extract_strided_slice %1 {offsets = [0, 0], sizes = [32, 1], strides = [1, 1]} : vector<32x3xf32> to vector<32x1xf32>
    %5 = vector.extract_strided_slice %3 {offsets = [0, 0], sizes = [1, 128], strides = [1, 1]} : vector<3x128xf32> to vector<1x128xf32>
    %6 = vector.broadcast %4 : vector<32x1xf32> to vector<32x128xf32>
    %7 = vector.broadcast %5 : vector<1x128xf32> to vector<32x128xf32>
    %8 = arith.subf %6, %7 : vector<32x128xf32>
    %9 = arith.mulf %8, %8 : vector<32x128xf32>
    %10 = vector.extract_strided_slice %1 {offsets = [0, 1], sizes = [32, 1], strides = [1, 1]} : vector<32x3xf32> to vector<32x1xf32>
    %11 = vector.extract_strided_slice %3 {offsets = [1, 0], sizes = [1, 128], strides = [1, 1]} : vector<3x128xf32> to vector<1x128xf32>
    %12 = vector.broadcast %10 : vector<32x1xf32> to vector<32x128xf32>
    %13 = vector.broadcast %11 : vector<1x128xf32> to vector<32x128xf32>
    %14 = arith.subf %12, %13 : vector<32x128xf32>
    %15 = arith.mulf %14, %14 : vector<32x128xf32>
    %16 = arith.addf %9, %15 : vector<32x128xf32>
    %17 = vector.extract_strided_slice %1 {offsets = [0, 2], sizes = [32, 1], strides = [1, 1]} : vector<32x3xf32> to vector<32x1xf32>
    %18 = vector.extract_strided_slice %3 {offsets = [2, 0], sizes = [1, 128], strides = [1, 1]} : vector<3x128xf32> to vector<1x128xf32>
    %19 = vector.broadcast %17 : vector<32x1xf32> to vector<32x128xf32>
    %20 = vector.broadcast %18 : vector<1x128xf32> to vector<32x128xf32>
    %21 = arith.subf %19, %20 : vector<32x128xf32>
    %22 = arith.mulf %21, %21 : vector<32x128xf32>
    %23 = arith.addf %16, %22 : vector<32x128xf32>
    %cst = arith.constant 2.250000e+00 : f32
    %24 = vector.broadcast %cst : f32 to vector<32x128xf32>
    %25 = arith.cmpf ole, %23, %24 : vector<32x128xf32>
    %26 = arith.extui %25 : vector<32x128xi1> to vector<32x128xi8>
    %c0_5 = arith.constant 0 : index
    %c0_6 = arith.constant 0 : index
    %c0_7 = arith.constant 0 : index
    %27 = vector.load %arg4[%c0_5, %c0_6, %c0_7] : memref<1x32x128xi8, #tpu.memory_space<vmem>>, vector<1x32x128xi8>
    %28 = vector.shape_cast %27 : vector<1x32x128xi8> to vector<32x128xi8>
    %29 = vector.shape_cast %26 : vector<32x128xi8> to vector<1x32x128xi8>
    tpu.vector_store %arg4[%c0_5, %c0_6, %c0_7], %29 {strides = array<i32>} : memref<1x32x128xi8, #tpu.memory_space<vmem>>, vector<1x32x128xi8>,
    return
  }
  func.func @transform_0(%arg0: i32, %arg1: i32) -> (i32, i32, i32) {
    %c0_i32 = arith.constant 0 : i32
    %c0_i32_0 = arith.constant 0 : i32
    return %arg0, %arg1, %c0_i32 : i32, i32, i32
  }
  func.func @transform_1(%arg0: i32, %arg1: i32) -> (i32, i32, i32) {
    %c0_i32 = arith.constant 0 : i32
    %c0_i32_0 = arith.constant 0 : i32
    %c0_i32_1 = arith.constant 0 : i32
    return %arg0, %c0_i32, %c0_i32_0 : i32, i32, i32
  }
  func.func @transform_2(%arg0: i32, %arg1: i32) -> (i32, i32, i32) {
    %c0_i32 = arith.constant 0 : i32
    %c0_i32_0 = arith.constant 0 : i32
    return %arg0, %arg1, %c0_i32 : i32, i32, i32
  }
}

</mosaic_0001>

<llo_original>
// kernel: tpu_custom_call.1
$region0: #{tpu_custom_call.1}
  #allocation0 [shape = 'u32[]', space=smem, size = 0x4, offset = 0x4, fixed_abs, tag = 'smem constant byte address 0x4 - core index']
  #allocation1 [shape = 'u32[144,128]{1,0:T(1,128)}', space=vmem, size = 0x12000, scoped, tag = 'internal scratch']
  %s0 = inlined_call_operand.vmem [shape: f32[2,32,3], index: 0, kind: input, shape index: {}]
  %s1 = inlined_call_operand.vmem [shape: f32[2,3,128], index: 1, kind: input, shape index: {}]
  %s2 = inlined_call_operand.hbm [shape: s8[2,32,128], index: 2, kind: output, shape index: {}]
  %s3 = sld [smem:[#allocation0]]
  $region41: #{tpu_custom_call.1} parent=0
    _
  %s5 = ssub.s32 1, %s3
  %s6 = scalar_select 0, %s5, %s3
  $region1: #{tpu_custom_call.1} parent=0
    #allocation2 [shape = 'u8[8192]{0}', space=vmem, size = 0x2000, scoped, tag = 'output window, operand 0']
    #allocation3 [shape = 's32[2]{0}', space=sflag, size = 0x8, scoped, tag = 'scoped memory for tpu_custom_call.1']
    %7 = vsyncpa [#allocation3], 0
    %s8 = scalar_lea.sflag [#allocation3], 1
    %9 = vsyncpa %s8, 0
    loop: start=0, step=1, limit=4
    $region2: #{tpu_custom_call.1} parent=1 // loop_pre_header
      _
    $region3: #{tpu_custom_call.1} parent=1 // loop_header
      %s11 = sphi 0, %s15
      %p12 = scmp.ge.s32.totalorder %s11, 4
      %s18 = sphi 0, %s30
      %s19 = sphi 0, %s26
      %s20 = sphi 0, %s18
      %s21 = sphi 0, %s19
      %s22 = sphi 0, %s20
      %s23 = sphi 0, %s21
      %s35 = sphi 0, %s37
      %s38 = sphi 0, %s35
      %s39 = sphi 0, %s38
      %s55 = sphi 0, %s39
      %s61 = sphi 0, %s63
      %s64 = sphi 0, %s61
      %s65 = sphi 0, %s64
      %s81 = sphi 0, %s65
      %s89 = sphi 0, %s91
      %s92 = sphi 0, %s89
      %s93 = sphi 0, %s92
      %s109 = sphi 0, %s93
    $region4: #{tpu_custom_call.1} parent=1 // loop_header_branch
      %14 = sbr.rel (%p12) target = $region8
    $region5: #{tpu_custom_call.1} parent=1 // loop_body
      %s16 = ssub.s32 %s11, 1
      %s17 = ssub.s32 %s11, 2
      %s24 = sadd.s32 1, %s19
      %p25 = scmp.ge.s32.totalorder %s24, 1
      %s26 = scalar_select %p25, 0, %s24
      %s27 = sadd.s32 1, %s18
      %s28 = scalar_select %p25, %s27, %s18
      %p29 = scmp.ge.s32.totalorder %s28, 2
      %s30 = scalar_select %p29, 0, %s28
      %s31 = ssub.s32 %s18, %s30
      %s32 = ssub.s32 %s19, %s26
      %s33 = sor.u32 %s31, %s32
      %p34 = scmp.eq.s32.totalorder %s33, 0
      %s36 = sadd.s32 %s35, 1
      %s37 = scalar_select %p34, %s35, %s36
      %p40 = pneg %p34
      %p41 = scmp.eq.s32.totalorder %s11, 1
      %p42 = por %p40, %p41
      %p43 = scmp.ne.s32.totalorder %s35, %s38
      %p44 = scmp.eq.s32.totalorder %s11, 0
      %p45 = por %p43, %p44
      %p46 = scmp.ne.s32.totalorder %s35, %s38
      %p47 = scmp.eq.s32.totalorder %s16, 1
      %p48 = por %p46, %p47
      %p49 = scmp.ne.s32.totalorder %s38, %s39
      %p50 = scmp.eq.s32.totalorder %s16, 0
      %p51 = por %p49, %p50
      %p52 = scmp.ne.s32.totalorder %s38, %s39
      %p53 = scmp.eq.s32.totalorder %s17, 1
      %p54 = por %p52, %p53
      %p56 = scmp.ne.s32.totalorder %s39, %s55
      %p57 = scmp.eq.s32.totalorder %s17, 0
      %p58 = por %p56, %p57
      %s59 = ssub.s32 %s18, %s30
      %p60 = scmp.eq.s32.totalorder %s59, 0
      %s62 = sadd.s32 %s61, 1
      %s63 = scalar_select %p60, %s61, %s62
      %p66 = pneg %p60
      %p67 = scmp.eq.s32.totalorder %s11, 1
      %p68 = por %p66, %p67
      %p69 = scmp.ne.s32.totalorder %s61, %s64
      %p70 = scmp.eq.s32.totalorder %s11, 0
      %p71 = por %p69, %p70
      %p72 = scmp.ne.s32.totalorder %s61, %s64
      %p73 = scmp.eq.s32.totalorder %s16, 1
      %p74 = por %p72, %p73
      %p75 = scmp.ne.s32.totalorder %s64, %s65
      %p76 = scmp.eq.s32.totalorder %s16, 0
      %p77 = por %p75, %p76
      %p78 = scmp.ne.s32.totalorder %s64, %s65
      %p79 = scmp.eq.s32.totalorder %s17, 1
      %p80 = por %p78, %p79
      %p82 = scmp.ne.s32.totalorder %s65, %s81
      %p83 = scmp.eq.s32.totalorder %s17, 0
      %p84 = por %p82, %p83
      %s85 = ssub.s32 %s18, %s30
      %s86 = ssub.s32 %s19, %s26
      %s87 = sor.u32 %s85, %s86
      %p88 = scmp.eq.s32.totalorder %s87, 0
      %s90 = sadd.s32 %s89, 1
      %s91 = scalar_select %p88, %s89, %s90
      %p94 = pneg %p88
      %p95 = scmp.eq.s32.totalorder %s11, 1
      %p96 = por %p94, %p95
      %p97 = scmp.ne.s32.totalorder %s89, %s92
      %p98 = scmp.eq.s32.totalorder %s11, 0
      %p99 = por %p97, %p98
      %p100 = scmp.ne.s32.totalorder %s89, %s92
      %p101 = scmp.eq.s32.totalorder %s16, 1
      %p102 = por %p100, %p101
      %p103 = scmp.ne.s32.totalorder %s92, %s93
      %p104 = scmp.eq.s32.totalorder %s16, 0
      %p105 = por %p103, %p104
      %p106 = scmp.ne.s32.totalorder %s92, %s93
      %p107 = scmp.eq.s32.totalorder %s17, 1
      %p108 = por %p106, %p107
      %p110 = scmp.ne.s32.totalorder %s93, %s109
      %p111 = scmp.eq.s32.totalorder %s17, 0
      %p112 = por %p110, %p111
      %p113 = scmp.le.s32.totalorder 1, %s11
      %p114 = scmp.lt.s32.totalorder %s11, 3
      %p115 = pnand %p113, %p114
      %p116 = pneg %p115
      // Predicated region
      $region9: #{tpu_custom_call.1} parent=5 // pred_check
        _
      $region10: #{tpu_custom_call.1} parent=5 // pred_check_branch
        %118 = sbr.rel (%p115) target = $region12
      $region11: #{tpu_custom_call.1} parent=5 // pred_region
        %s119 = ssub.s32 %s11, 1
      $region12: #{tpu_custom_call.1} parent=5 // pred_fallthru
        _
      %p120 = scmp.lt.s32.totalorder %s11, 2
      // Predicated region
      $region13: #{tpu_custom_call.1} parent=5 // pred_check
        %p121 = pneg %p120
      $region14: #{tpu_custom_call.1} parent=5 // pred_check_branch
        %123 = sbr.rel (%p121) target = $region16
      $region15: #{tpu_custom_call.1} parent=5 // pred_region
        // Predicated region
        $region17: #{tpu_custom_call.1} parent=15 // pred_check
          %p124 = pneg %p45
        $region18: #{tpu_custom_call.1} parent=15 // pred_check_branch
          %126 = sbr.rel (%p124) target = $region20
        $region19: #{tpu_custom_call.1} parent=15 // pred_region
          %s127 = smul.u32 4, %s19
          %p128 = scmp.lt.s32.totalorder %s18, 1
          %s129 = scalar_select %p128, %s18, 1
          %p130 = scmp.lt.s32.totalorder %s127, 3
          %s131 = scalar_select %p130, %s127, 3
          %s132 = smul.addr %s129, 4
          %s133 = sadd.s32 %s131, %s132
          %s134 = smul.addr %s133, 8
          %s135 = scalar_lea.vmem %s0, %s134
          %s136 = smul.u32 4, %s19
        $region20: #{tpu_custom_call.1} parent=15 // pred_fallthru
          _
        // Predicated region
        $region21: #{tpu_custom_call.1} parent=15 // pred_check
          %p137 = pneg %p71
        $region22: #{tpu_custom_call.1} parent=15 // pred_check_branch
          %139 = sbr.rel (%p137) target = $region24
        $region23: #{tpu_custom_call.1} parent=15 // pred_region
          %p140 = scmp.lt.s32.totalorder %s18, 1
          %s141 = scalar_select %p140, %s18, 1
          %s142 = smul.addr %s141, 4
          %s143 = scalar_lea.vmem %s1, %s142
        $region24: #{tpu_custom_call.1} parent=15 // pred_fallthru
          _
      $region16: #{tpu_custom_call.1} parent=5 // pred_fallthru
        _
      %p144 = scmp.le.s32.totalorder 1, %s11
      %p145 = scmp.lt.s32.totalorder %s11, 3
      %p146 = pnand %p144, %p145
      %p147 = pneg %p146
      // Predicated region
      $region25: #{tpu_custom_call.1} parent=5 // pred_check
        _
      $region26: #{tpu_custom_call.1} parent=5 // pred_check_branch
        %149 = sbr.rel (%p146) target = $region28
      $region27: #{tpu_custom_call.1} parent=5 // pred_region
        %s150 = ssub.s32 %s11, 1
        %s151 = smul.u32 4, %s21
        %p152 = scmp.lt.s32.totalorder %s20, 1
        %s153 = scalar_select %p152, %s20, 1
        %p154 = scmp.lt.s32.totalorder %s151, 3
        %s155 = scalar_select %p154, %s151, 3
        %s156 = smul.addr %s153, 4
        %s157 = sadd.s32 %s155, %s156
        %s158 = smul.addr %s157, 8
        %s159 = scalar_lea.vmem %s0, %s158
        %p160 = pneg %p51
        %p161 = pneg %p48
        %p162 = scmp.lt.s32.totalorder %s20, 1
        %s163 = scalar_select %p162, %s20, 1
        %s164 = smul.addr %s163, 4
        %s165 = scalar_lea.vmem %s1, %s164
        %p166 = pneg %p77
        %p167 = pneg %p74
        %p168 = pneg %p105
        %p169 = pneg %p102
        %s170 = sand.u32 %s92, 1
        %s171 = scalar_lea.sflag [#allocation3], %s170
        %s172 = sand.u32 %s92, 1
        %s173 = smul.addr %s172, 8
        %s174 = scalar_lea.vmem [#allocation2], %s173
        %s175 = smul.u32 4, %s21
        %p176 = scmp.lt.s32.totalorder %s20, 1
        %s177 = scalar_select %p176, %s20, 1
        %p178 = scmp.lt.s32.totalorder %s175, 3
        %s179 = scalar_select %p178, %s175, 3
        %s180 = smul.addr %s177, 4
        %s181 = sadd.s32 %s179, %s180
        %s182 = smul.addr %s181, 8
        %s183 = scalar_lea.vmem %s0, %s182
        %s184 = smul.u32 4, %s21
        %p185 = scmp.lt.s32.totalorder %s20, 1
        %s186 = scalar_select %p185, %s20, 1
        %s187 = smul.addr %s186, 4
        %s188 = scalar_lea.vmem %s1, %s187
        %v191 = vld [vmem:[%s183] sm:$0xff]
        %v192 = vld [vmem:[%s183 + $0x8] sm:$0xff]
        %v193 = vld [vmem:[%s183 + $0x10] sm:$0xff]
        %v194 = vld [vmem:[%s183 + $0x18] sm:$0xff]
        %v195 = vld [vmem:[%s188] sm:$0x7]
        %197 = vset.pattern.permute.xlu0 0
        %198 = vperm.xlu0 %197, %v191
        %v199 = vpop.permute.xlu0 %198
        %202 = vset.pattern.permute.xlu0 0
        %203 = vperm.xlu0 %202, %v192
        %v204 = vpop.permute.xlu0 %203
        %207 = vset.pattern.permute.xlu0 0
        %208 = vperm.xlu0 %207, %v193
        %v209 = vpop.permute.xlu0 %208
        %212 = vset.pattern.permute.xlu0 0
        %213 = vperm.xlu0 %212, %v194
        %v214 = vpop.permute.xlu0 %213
        %v216 = vlaneseq
        %v217 = vshrl.u32 %v216, 7
        %v218 = vsub.s32 0, %v217
        %v219 = vrot.slane %v195, %v218
        %v220 = vsub.f32 %v199, %v219
        %v221 = vsub.f32 %v204, %v219
        %v222 = vsub.f32 %v209, %v219
        %v223 = vsub.f32 %v214, %v219
        %v224 = vmul.f32 %v220, %v220
        %v225 = vmul.f32 %v221, %v221
        %v226 = vmul.f32 %v222, %v222
        %v227 = vmul.f32 %v223, %v223
        %228 = vset.pattern.permute.xlu0 1
        %229 = vperm.xlu0 %228, %v191
        %v230 = vpop.permute.xlu0 %229
        %232 = vset.pattern.permute.xlu0 1
        %233 = vperm.xlu0 %232, %v192
        %v234 = vpop.permute.xlu0 %233
        %236 = vset.pattern.permute.xlu0 1
        %237 = vperm.xlu0 %236, %v193
        %v238 = vpop.permute.xlu0 %237
        %240 = vset.pattern.permute.xlu0 1
        %241 = vperm.xlu0 %240, %v194
        %v242 = vpop.permute.xlu0 %241
        %v244 = vlaneseq
        %v245 = vshrl.u32 %v244, 7
        %v246 = vsub.s32 1, %v245
        %v247 = vrot.slane %v195, %v246
        %v248 = vsub.f32 %v230, %v247
        %v249 = vsub.f32 %v234, %v247
        %v250 = vsub.f32 %v238, %v247
        %v251 = vsub.f32 %v242, %v247
        %v252 = vmul.f32 %v248, %v248
        %v253 = vmul.f32 %v249, %v249
        %v254 = vmul.f32 %v250, %v250
        %v255 = vmul.f32 %v251, %v251
        %v256 = vadd.f32 %v224, %v252
        %v257 = vadd.f32 %v225, %v253
        %v258 = vadd.f32 %v226, %v254
        %v259 = vadd.f32 %v227, %v255
        %260 = vset.pattern.permute.xlu0 2
        %261 = vperm.xlu0 %260, %v191
        %v262 = vpop.permute.xlu0 %261
        %264 = vset.pattern.permute.xlu0 2
        %265 = vperm.xlu0 %264, %v192
        %v266 = vpop.permute.xlu0 %265
        %268 = vset.pattern.permute.xlu0 2
        %269 = vperm.xlu0 %268, %v193
        %v270 = vpop.permute.xlu0 %269
        %272 = vset.pattern.permute.xlu0 2
        %273 = vperm.xlu0 %272, %v194
        %v274 = vpop.permute.xlu0 %273
        %v276 = vlaneseq
        %v277 = vshrl.u32 %v276, 7
        %v278 = vsub.s32 2, %v277
        %v279 = vrot.slane %v195, %v278
        %v280 = vsub.f32 %v262, %v279
        %v281 = vsub.f32 %v266, %v279
        %v282 = vsub.f32 %v270, %v279
        %v283 = vsub.f32 %v274, %v279
        %v284 = vmul.f32 %v280, %v280
        %v285 = vmul.f32 %v281, %v281
        %v286 = vmul.f32 %v282, %v282
        %v287 = vmul.f32 %v283, %v283
        %v288 = vadd.f32 %v256, %v284
        %v289 = vadd.f32 %v257, %v285
        %v290 = vadd.f32 %v258, %v286
        %v291 = vadd.f32 %v259, %v287
        %vm292 = vcmp.le.f32.partialorder %v288, 2.25
        %vm293 = vcmp.le.f32.partialorder %v289, 2.25
        %vm294 = vcmp.le.f32.partialorder %v290, 2.25
        %vm295 = vcmp.le.f32.partialorder %v291, 2.25
        %vm296 = vmpackc.low %vm293, %vm292
        %vm297 = vmpackc.low %vm295, %vm294
        %vm298 = vmpackc.even %vm297, %vm296
        %v299 = vsel %vm298, 16843009, 0
        %300 = vst [vmem:[%s174] sm:$0xff] %v299
        %s301 = sand.u32 %s92, 1
        %s302 = scalar_lea.sflag [#allocation3], %s301
        %s303 = sand.u32 %s92, 1
        %s304 = smul.addr %s303, 8
        %s305 = scalar_lea.vmem [#allocation2], %s304
        // Predicated region
        $region29: #{tpu_custom_call.1} parent=27 // pred_check
          %p306 = pneg %p102
        $region30: #{tpu_custom_call.1} parent=27 // pred_check_branch
          %308 = sbr.rel (%p306) target = $region32
        $region31: #{tpu_custom_call.1} parent=27 // pred_region
          %s310 = ssub.s32 128, 128
          %311 = vsyncadd %s302, %s310
          %s312 = sadd.s32 %s21, %s20
          %s313 = smul.addr %s312, 128
          %s314 = scalar_lea.hbm %s2, %s313
          %s316 = sshll.u32 %s305, 4
          %s317 = int_to_ptr.vmem [resolvable:$true] %s316
          %319 = dma.vmem_to_hbm [thread:$0]  %s317, 128, %s314, %s302
        $region32: #{tpu_custom_call.1} parent=27 // pred_fallthru
          _
      $region28: #{tpu_custom_call.1} parent=5 // pred_fallthru
        _
      %p320 = scmp.le.s32.totalorder 2, %s11
      // Predicated region
      $region33: #{tpu_custom_call.1} parent=5 // pred_check
        %p321 = pneg %p320
      $region34: #{tpu_custom_call.1} parent=5 // pred_check_branch
        %323 = sbr.rel (%p321) target = $region36
      $region35: #{tpu_custom_call.1} parent=5 // pred_region
        %s324 = ssub.s32 %s11, 2
        // Predicated region
        $region37: #{tpu_custom_call.1} parent=35 // pred_check
          %p325 = pneg %p108
        $region38: #{tpu_custom_call.1} parent=35 // pred_check_branch
          %327 = sbr.rel (%p325) target = $region40
        $region39: #{tpu_custom_call.1} parent=35 // pred_region
          %s328 = sand.u32 %s93, 1
          %s329 = scalar_lea.sflag [#allocation3], %s328
          %s330 = sand.u32 %s93, 1
          %s331 = smul.addr %s330, 8
          %s332 = scalar_lea.vmem [#allocation2], %s331
          %333 = dma.done %s329, 128
        $region40: #{tpu_custom_call.1} parent=35 // pred_fallthru
          _
      $region36: #{tpu_custom_call.1} parent=5 // pred_fallthru
        _
    $region6: #{tpu_custom_call.1} parent=1 // loop_footer
      %s15 = sadd.s32 1, %s11
    $region7: #{tpu_custom_call.1} parent=1 // loop_footer_branch
      %10 = sbr.rel target = $region3
    $region8: #{tpu_custom_call.1} parent=1 // loop_exit
      _
    %334 = vsyncpa [#allocation3], 1
    %s335 = scalar_lea.sflag [#allocation3], 1
    %336 = vsyncpa %s335, 1

</llo_original>
